<compile_context>
chip_gen: v6e
topology: v6e:2x2x1
jax: 0.10.0
libtpu: 0.0.40
codegen_flags: <defaults>
</compile_context>

<pallas_src>
import jax
import jax.numpy as jnp
from jax.experimental import pallas as pl
from jax.experimental.pallas import tpu as pltpu

# Fixed Laplace weights (same values nn.Conv2d weight is set to in the module's __init__).
_LAPLACE_W = (
    (0.25, 0.5, 0.25),
    (0.5, -3.0, 0.5),
    (0.25, 0.5, 0.25),
)

_MIN_HALO_TILE_ROWS = 128  # keep the 16-row halo re-read <= 12.5% of a tile


def _cdiv(a, b):
    return -(-a // b)


def _tpu_budgets():
    """(row-tile byte target, vmem_limit_bytes), sized per TPU generation."""
    try:
        vmem = pltpu.get_tpu_info().vmem_capacity_bytes
    except Exception:
        vmem = 64 << 20  # conservative if the query is unavailable
    if vmem <= (64 << 20):            # v7x-class: 64 MiB VMEM per TensorCore
        return 1 << 20, 32 << 20
    return 4 << 20, 64 << 20          # v5e / v6e: 128 MiB VMEM


def _pick_tile_rows(R, W, target_bytes):
    """Row-tile size (multiple of 8).  The caller pads R up to a multiple of the result."""
    row_bytes = 4 * max(W, 1)
    budget_rows = max(8, (target_bytes // row_bytes) // 8 * 8)
    r8 = _cdiv(R, 8) * 8
    if r8 <= max(budget_rows, _MIN_HALO_TILE_ROWS):
        return r8                          # one comfortable tile: no halo blocks at all
    tr = budget_rows
    if r8 // tr < 4:                       # >= 4 grid steps (>= 2 per TensorCore on v7x)
        tr = max(8, (r8 // 4) // 8 * 8)
    if tr < _MIN_HALO_TILE_ROWS:           # halo-overhead floor, but never exceed the budget
        tr = min(_MIN_HALO_TILE_ROWS, budget_rows, r8)
    return max(tr, 8)


def _make_laplace_kernel(H, TR, with_halo):
    TOP = 7           # scratch row holding rc of the row just above this tile
    BASE = 8          # scratch rows [BASE, BASE+TR) hold rc of the tile rows (8-aligned store)
    BOT = TR + 8      # scratch row holding rc of the row just below this tile

    def blend_w(v):
        # 3-tap [0.5, 1, 0.5] along the last (lane) axis with zero padding at the edges.
        r, w = v.shape
        z = jnp.zeros((r, 1), jnp.float32)
        left = jnp.concatenate([z, v[:, : w - 1]], axis=1)   # v[:, j-1], 0 at j == 0
        right = jnp.concatenate([v[:, 1:], z], axis=1)       # v[:, j+1], 0 at j == w-1
        return v + 0.5 * (left + right)

    def kernel(*refs):
        if with_halo:
            x_ref, top_ref, bot_ref, o_ref, rc_ref = refs
        else:
            x_ref, o_ref, rc_ref = refs
        tr, w = o_ref.shape

        x = x_ref[...].astype(jnp.float32)       # (TR, W) row tile of the stacked images
        rc = blend_w(x)                          # W-direction blend of this tile
        rc_ref[pl.ds(BASE, tr), :] = rc          # 8-aligned scratch store

        if with_halo:
            # rc of the single row just above / below this tile (last / first row of the
            # clamped 8-row halo blocks).  At the outer edges the clamped rows are garbage but
            # are always masked out below (jnp.where selects, it never multiplies garbage).
            rc_ref[pl.ds(TOP, 1), :] = blend_w(top_ref[pl.ds(7, 1), :].astype(jnp.float32))
            rc_ref[pl.ds(BOT, 1), :] = blend_w(bot_ref[pl.ds(0, 1), :].astype(jnp.float32))
        else:
            z = jnp.zeros((1, w), jnp.float32)
            rc_ref[pl.ds(TOP, 1), :] = z
            rc_ref[pl.ds(BOT, 1), :] = z

        # Per-row (TR, 1) image-boundary masks, broadcast along lanes inside jnp.where.  They
        # zero the H-direction contribution across image seams, which also reproduces the
        # conv's zero padding at the first / last row of every image.
        i = jax.lax.broadcasted_iota(jnp.int32, (tr, 1), 0)
        if TR % H == 0:
            row_in_img = i % H                                   # independent of the grid step
        else:
            row_in_img = (pl.program_id(0) * tr + i) % H
        up_ok = row_in_img != 0
        dn_ok = row_in_img != (H - 1)

        # H-direction neighbours are ref *slices* of the rc scratch (no sublane concatenates).
        up = jnp.where(up_ok, rc_ref[pl.ds(TOP, tr), :], 0.0)        # blended row i-1
        dn = jnp.where(dn_ok, rc_ref[pl.ds(BASE + 1, tr), :], 0.0)   # blended row i+1

        # Separable Laplace: outer([.5, 1, .5], [.5, 1, .5]) - 4 * center.
        o_ref[...] = (rc + 0.5 * (up + dn) - 4.0 * x).astype(o_ref.dtype)

    return kernel


def laplace_forward(x, tile_rows=None):
    """x: (N, 1, H, W) float, returns (N, 1, H, W) — matches Laplace.forward."""
    N, C, H, W = x.shape
    assert C == 1, "Laplace module is Conv2d(1, 1, ...): requires a single input channel"
    work_dtype = x.dtype if x.dtype in (jnp.float32, jnp.bfloat16) else jnp.float32
    R = N * H
    x2 = x.reshape(R, W).astype(work_dtype)      # free reshape: images stacked along rows

    target_bytes, vmem_limit = _tpu_budgets()
    if tile_rows is None:
        TR = _pick_tile_rows(R, W, target_bytes)
    else:
        TR = max(8, _cdiv(int(tile_rows), 8) * 8)
        TR = min(TR, _cdiv(R, 8) * 8)

    R_pad = _cdiv(R, TR) * TR
    if R_pad != R:
        # Rare host-side zero pad along rows only (keeps the pipelined multi-tile path).
        x2 = jnp.pad(x2, ((0, R_pad - R), (0, 0)))
    with_halo = R_pad > TR
    grid = (R_pad // TR,)

    kernel = _make_laplace_kernel(H, TR, with_halo)
    itemsize = x2.dtype.itemsize

    if with_halo:
        nb = TR // 8                              # tile height in 8-row halo-block units
        last_blk = R_pad // 8 - 1
        in_specs = [
            pl.BlockSpec((TR, W), lambda t: (t, 0)),
            # 8-row block ending just above this tile (clamped at the top edge).
            pl.BlockSpec((8, W), lambda t: (jnp.maximum(t * nb - 1, 0), 0)),
            # 8-row block starting just below this tile (clamped at the bottom edge).
            pl.BlockSpec((8, W), lambda t: (jnp.minimum((t + 1) * nb, last_blk), 0)),
        ]
        args = (x2, x2, x2)
        halo_bytes = (R_pad // TR) * 2 * 8 * W * itemsize
    else:
        in_specs = [pl.BlockSpec((TR, W), lambda t: (t, 0))]
        args = (x2,)
        halo_bytes = 0

    out = pl.pallas_call(
        kernel,
        out_shape=jax.ShapeDtypeStruct((R_pad, W), work_dtype),
        grid_spec=pltpu.PrefetchScalarGridSpec(
            num_scalar_prefetch=0,
            grid=grid,
            in_specs=in_specs,
            out_specs=pl.BlockSpec((TR, W), lambda t: (t, 0)),
            scratch_shapes=[pltpu.VMEM((TR + 16, W), jnp.float32)],
        ),
        compiler_params=pltpu.CompilerParams(
            dimension_semantics=("parallel",),
            vmem_limit_bytes=vmem_limit,
        ),
        cost_estimate=pl.CostEstimate(
            flops=14 * R_pad * W,
            transcendentals=0,
            bytes_accessed=2 * R_pad * W * itemsize + halo_bytes,
        ),
    )(*args)
    if R_pad != R:
        out = out[:R]
    return out.reshape(N, C, H, W)


def _reference(x):
    """Pure-JAX reference: conv2d with the fixed Laplace kernel, padding=1."""
    w = jnp.array(_LAPLACE_W, dtype=jnp.float32)[None, None, :, :]  # OIHW (1,1,3,3)
    return jax.lax.conv_general_dilated(
        x.astype(jnp.float32), w,
        window_strides=(1, 1), padding=((1, 1), (1, 1)),
        dimension_numbers=("NCHW", "OIHW", "NCHW"),
    )


if __name__ == "__main__":
    key = jax.random.PRNGKey(0)
    # Conv2d(1, 1, ...) implies a single channel: (batch=2, channels=1, spatial=16x16).
    x = jax.random.normal(key, (2, 1, 16, 16), dtype=jnp.float32)

    y = jax.block_until_ready(laplace_forward(x))
    y_ref = jax.block_until_ready(_reference(x))
    assert y.shape == x.shape and y.dtype == jnp.float32
    assert jnp.allclose(y, y_ref, atol=1e-5, rtol=1e-5)

    # Exercise the multi-tile halo path with a tile boundary in the middle of an image.
    y8 = jax.block_until_ready(laplace_forward(x, tile_rows=8))
    assert jnp.allclose(y8, y_ref, atol=1e-5, rtol=1e-5)

    # Row count not a multiple of 8 -> host zero-pad + slice path (single- and multi-tile).
    x_odd = jax.random.normal(jax.random.PRNGKey(1), (1, 1, 10, 12), dtype=jnp.float32)
    y_odd_ref = jax.block_until_ready(_reference(x_odd))
    y_odd = jax.block_until_ready(laplace_forward(x_odd))
    assert jnp.allclose(y_odd, y_odd_ref, atol=1e-5, rtol=1e-5)
    y_odd8 = jax.block_until_ready(laplace_forward(x_odd, tile_rows=8))
    assert jnp.allclose(y_odd8, y_odd_ref, atol=1e-5, rtol=1e-5)

    print("KERNEL_OK")
</pallas_src>

<mosaic_0001>
module attributes {stable_mosaic.version = 11 : i64} {
  func.func @kernel(%arg0: i32, %arg1: memref<32x16xf32, #tpu.memory_space<vmem>>, %arg2: memref<32x16xf32, #tpu.memory_space<vmem>>, %arg3: memref<48x16xf32, #tpu.memory_space<vmem>>) attributes {dimension_semantics = [#tpu.dimension_semantics<parallel>], iteration_bounds = array<i64: 1>, scalar_prefetch = 0 : i64, scratch_operands = 1 : i64, tpu.core_type = #tpu.core_type<tc>, window_params = [{transform_indices = @transform_0, window_bounds = array<i64: 32, 16>}, {transform_indices = @transform_1, window_bounds = array<i64: 32, 16>}]} {
    %c0 = arith.constant 0 : index
    %c0_0 = arith.constant 0 : index
    %0 = vector.load %arg1[%c0, %c0_0] : memref<32x16xf32, #tpu.memory_space<vmem>>, vector<32x16xf32>
    %cst = arith.constant 0.000000e+00 : f32
    %1 = vector.broadcast %cst : f32 to vector<32x1xf32>
    %2 = vector.extract_strided_slice %0 {offsets = [0, 0], sizes = [32, 15], strides = [1, 1]} : vector<32x16xf32> to vector<32x15xf32>
    %3 = tpu.concatenate %1, %2 in 1 : vector<32x1xf32>, vector<32x15xf32> -> vector<32x16xf32>
    %4 = vector.extract_strided_slice %0 {offsets = [0, 1], sizes = [32, 15], strides = [1, 1]} : vector<32x16xf32> to vector<32x15xf32>
    %5 = tpu.concatenate %4, %1 in 1 : vector<32x15xf32>, vector<32x1xf32> -> vector<32x16xf32>
    %6 = arith.addf %3, %5 : vector<32x16xf32>
    %cst_1 = arith.constant 5.000000e-01 : f32
    %7 = vector.broadcast %cst_1 : f32 to vector<32x16xf32>
    %8 = arith.mulf %7, %6 : vector<32x16xf32>
    %9 = arith.addf %0, %8 : vector<32x16xf32>
    %c8 = arith.constant 8 : index
    %c0_2 = arith.constant 0 : index
    %10 = vector.load %arg3[%c8, %c0_2] : memref<48x16xf32, #tpu.memory_space<vmem>>, vector<32x16xf32>
    tpu.vector_store %arg3[%c8, %c0_2], %9 {strides = array<i32>} : memref<48x16xf32, #tpu.memory_space<vmem>>, vector<32x16xf32>,
    %cst_3 = arith.constant 0.000000e+00 : f32
    %11 = vector.broadcast %cst_3 : f32 to vector<1x16xf32>
    %c7 = arith.constant 7 : index
    %c0_4 = arith.constant 0 : index
    %12 = vector.load %arg3[%c7, %c0_4] : memref<48x16xf32, #tpu.memory_space<vmem>>, vector<1x16xf32>
    tpu.vector_store %arg3[%c7, %c0_4], %11 {strides = array<i32>} : memref<48x16xf32, #tpu.memory_space<vmem>>, vector<1x16xf32>,
    %c40 = arith.constant 40 : index
    %c0_5 = arith.constant 0 : index
    %13 = vector.load %arg3[%c40, %c0_5] : memref<48x16xf32, #tpu.memory_space<vmem>>, vector<1x16xf32>
    tpu.vector_store %arg3[%c40, %c0_5], %11 {strides = array<i32>} : memref<48x16xf32, #tpu.memory_space<vmem>>, vector<1x16xf32>,
    %14 = tpu.iota {dimensions = array<i32: 0>} : vector<32x1xi32>
    %c16_i32 = arith.constant 16 : i32
    %c0_i32 = arith.constant 0 : i32
    %15 = arith.cmpi eq, %c16_i32, %c0_i32 : i32
    %c1_i32 = arith.constant 1 : i32
    %16 = arith.select %15, %c1_i32, %c16_i32 : i32
    %17 = vector.broadcast %16 : i32 to vector<32x1xi32>
    %18 = arith.remsi %14, %17 : vector<32x1xi32>
    %c0_i32_6 = arith.constant 0 : i32
    %19 = vector.broadcast %c0_i32_6 : i32 to vector<32x1xi32>
    %20 = arith.cmpi ne, %18, %19 : vector<32x1xi32>
    %c0_i32_7 = arith.constant 0 : i32
    %21 = vector.broadcast %c0_i32_7 : i32 to vector<32x1xi32>
    %22 = arith.cmpi slt, %18, %21 : vector<32x1xi32>
    %c0_i32_8 = arith.constant 0 : i32
    %23 = arith.cmpi slt, %16, %c0_i32_8 : i32
    %24 = vector.broadcast %23 : i1 to vector<32x1xi1>
    %25 = vector.broadcast %24 : vector<32x1xi1> to vector<32x1xi1>
    %26 = arith.xori %22, %25 : vector<32x1xi1>
    %27 = arith.andi %26, %20 : vector<32x1xi1>
    %28 = vector.broadcast %16 : i32 to vector<32x1xi32>
    %29 = arith.addi %18, %28 : vector<32x1xi32>
    %30 = arith.select %27, %29, %18 : vector<32x1xi1>, vector<32x1xi32>
    %c0_i32_9 = arith.constant 0 : i32
    %31 = vector.broadcast %c0_i32_9 : i32 to vector<32x1xi32>
    %32 = arith.cmpi ne, %30, %31 : vector<32x1xi32>
    %c15_i32 = arith.constant 15 : i32
    %33 = vector.broadcast %c15_i32 : i32 to vector<32x1xi32>
    %34 = arith.cmpi ne, %30, %33 : vector<32x1xi32>
    %c7_10 = arith.constant 7 : index
    %c0_11 = arith.constant 0 : index
    %35 = vector.load %arg3[%c7_10, %c0_11] : memref<48x16xf32, #tpu.memory_space<vmem>>, vector<32x16xf32>
    %cst_12 = arith.constant 0.000000e+00 : f32
    %36 = vector.shape_cast %32 : vector<32x1xi1> to vector<32x1xi1>
    %37 = vector.broadcast %36 : vector<32x1xi1> to vector<32x16xi1>
    %38 = vector.broadcast %cst_12 : f32 to vector<32x16xf32>
    %39 = arith.select %37, %35, %38 : vector<32x16xi1>, vector<32x16xf32>
    %c9 = arith.constant 9 : index
    %c0_13 = arith.constant 0 : index
    %40 = vector.load %arg3[%c9, %c0_13] : memref<48x16xf32, #tpu.memory_space<vmem>>, vector<32x16xf32>
    %cst_14 = arith.constant 0.000000e+00 : f32
    %41 = vector.shape_cast %34 : vector<32x1xi1> to vector<32x1xi1>
    %42 = vector.broadcast %41 : vector<32x1xi1> to vector<32x16xi1>
    %43 = vector.broadcast %cst_14 : f32 to vector<32x16xf32>
    %44 = arith.select %42, %40, %43 : vector<32x16xi1>, vector<32x16xf32>
    %45 = arith.addf %39, %44 : vector<32x16xf32>
    %cst_15 = arith.constant 5.000000e-01 : f32
    %46 = vector.broadcast %cst_15 : f32 to vector<32x16xf32>
    %47 = arith.mulf %46, %45 : vector<32x16xf32>
    %48 = arith.addf %9, %47 : vector<32x16xf32>
    %cst_16 = arith.constant 4.000000e+00 : f32
    %49 = vector.broadcast %cst_16 : f32 to vector<32x16xf32>
    %50 = arith.mulf %49, %0 : vector<32x16xf32>
    %51 = arith.subf %48, %50 : vector<32x16xf32>
    %c0_17 = arith.constant 0 : index
    %c0_18 = arith.constant 0 : index
    %52 = vector.load %arg2[%c0_17, %c0_18] : memref<32x16xf32, #tpu.memory_space<vmem>>, vector<32x16xf32>
    tpu.vector_store %arg2[%c0_17, %c0_18], %51 {strides = array<i32>} : memref<32x16xf32, #tpu.memory_space<vmem>>, vector<32x16xf32>,
    return
  }
  func.func @transform_0(%arg0: i32) -> (i32, i32) {
    %c0_i32 = arith.constant 0 : i32
    %c0_i32_0 = arith.constant 0 : i32
    return %arg0, %c0_i32 : i32, i32
  }
  func.func @transform_1(%arg0: i32) -> (i32, i32) {
    %c0_i32 = arith.constant 0 : i32
    %c0_i32_0 = arith.constant 0 : i32
    return %arg0, %c0_i32 : i32, i32
  }
}

</mosaic_0001>

<llo_original>
// kernel: tpu_custom_call.1
$region0: #{tpu_custom_call.1}
  #allocation0 [shape = 'u32[]', space=smem, size = 0x4, offset = 0x4, fixed_abs, tag = 'smem constant byte address 0x4 - core index']
  #allocation1 [shape = 'u32[144,128]{1,0:T(1,128)}', space=vmem, size = 0x12000, scoped, tag = 'internal scratch']
  #allocation2 [shape = 'f32[48,16]{1,0:T(8,128)}', space=vmem, size = 0x6000, scoped, tag = 'scratch operand']
  %s0 = inlined_call_operand.vmem [shape: f32[32,16], index: 0, kind: input, shape index: {}]
  %s1 = inlined_call_operand.vmem [shape: f32[32,16], index: 1, kind: output, shape index: {}]
  %s2 = sld [smem:[#allocation0]]
  $region14: #{tpu_custom_call.1} parent=0
    _
  %s4 = ssub.s32 1, %s2
  %s5 = scalar_select 0, %s4, %s2
  // Predicated region
  $region2: #{tpu_custom_call.1} parent=0 // pred_check
    _
  $region3: #{tpu_custom_call.1} parent=0 // pred_check_branch
    %7 = sbr.rel (0) target = $region5
  $region4: #{tpu_custom_call.1} parent=0 // pred_region
    _
  $region5: #{tpu_custom_call.1} parent=0 // pred_fallthru
    _
  %v8 = vld [vmem:[%s0] sm:$0xff]
  %v9 = vld [vmem:[%s0 + $0x8] sm:$0xff]
  %v10 = vld [vmem:[%s0 + $0x10] sm:$0xff]
  %v11 = vld [vmem:[%s0 + $0x18] sm:$0xff]
  %16 = vrot.lane.b32.xlu0 %v8, 1
  %v17 = vpop.permute.xlu0 %16
  %18 = vrot.lane.b32.xlu0 %v9, 1
  %v19 = vpop.permute.xlu0 %18
  %20 = vrot.lane.b32.xlu0 %v10, 1
  %v21 = vpop.permute.xlu0 %20
  %22 = vrot.lane.b32.xlu0 %v11, 1
  %v23 = vpop.permute.xlu0 %22
  %vm28 = vcmask 7168
  %v29 = vsel %vm28, 0.0, %v17
  %v30 = vsel %vm28, 0.0, %v19
  %v31 = vsel %vm28, 0.0, %v21
  %v32 = vsel %vm28, 0.0, %v23
  %33 = vrot.lane.b32.xlu0 %v8, 127
  %v34 = vpop.permute.xlu0 %33
  %35 = vrot.lane.b32.xlu0 %v9, 127
  %v36 = vpop.permute.xlu0 %35
  %37 = vrot.lane.b32.xlu0 %v10, 127
  %v38 = vpop.permute.xlu0 %37
  %39 = vrot.lane.b32.xlu0 %v11, 127
  %v40 = vpop.permute.xlu0 %39
  %vm45 = vcmask 121856
  %v46 = vsel %vm45, %v34, 0.0
  %v47 = vsel %vm45, %v36, 0.0
  %v48 = vsel %vm45, %v38, 0.0
  %v49 = vsel %vm45, %v40, 0.0
  %v50 = vadd.f32 %v29, %v46
  %v51 = vadd.f32 %v30, %v47
  %v52 = vadd.f32 %v31, %v48
  %v53 = vadd.f32 %v32, %v49
  %v54 = vmul.f32 %v50, 0.5
  %v55 = vmul.f32 %v51, 0.5
  %v56 = vmul.f32 %v52, 0.5
  %v57 = vmul.f32 %v53, 0.5
  %v58 = vadd.f32 %v8, %v54
  %v59 = vadd.f32 %v9, %v55
  %v60 = vadd.f32 %v10, %v56
  %v61 = vadd.f32 %v11, %v57
  %vm62 = vcmask 130048
  %63 = vst.msk [vmem:[#allocation2 + $0x8] sm:$0xff] %vm62, %v58
  %64 = vst.msk [vmem:[#allocation2 + $0x10] sm:$0xff] %vm62, %v59
  %65 = vst.msk [vmem:[#allocation2 + $0x18] sm:$0xff] %vm62, %v60
  %66 = vst.msk [vmem:[#allocation2 + $0x20] sm:$0xff] %vm62, %v61
  %vm67 = vcmask 122880
  %68 = vst.msk [vmem:[#allocation2 + $0x7] sm:$0x1] %vm67, 0.0
  %69 = vst.msk [vmem:[#allocation2 + $0x28] sm:$0x1] %vm67, 0.0
  %v70 = vlaneseq
  %v71 = vshrl.u32 %v70, 7
  %v72 = vadd.s32 %v71, 8
  %v73 = vadd.s32 %v71, 16
  %v74 = vadd.s32 %v71, 24
  %vm75 = vcmp.lt.s32.totalorder %v71, 0
  %v76 = vsub.s32 0, %v71
  %v77 = vsel %vm75, %v76, %v71
  %v78 = vshrl.u32 %v77, 4
  %v79 = vand.u32 %v77, 15
  %v80 = vsub.s32 0, %v79
  %v81 = vsel %vm75, %v80, %v79
  %vm82 = vcmp.lt.s32.totalorder %v72, 0
  %v83 = vsub.s32 0, %v72
  %v84 = vsel %vm82, %v83, %v72
  %v85 = vshrl.u32 %v84, 4
  %v86 = vand.u32 %v84, 15
  %v87 = vsub.s32 0, %v86
  %v88 = vsel %vm82, %v87, %v86
  %vm89 = vcmp.lt.s32.totalorder %v73, 0
  %v90 = vsub.s32 0, %v73
  %v91 = vsel %vm89, %v90, %v73
  %v92 = vshrl.u32 %v91, 4
  %v93 = vand.u32 %v91, 15
  %v94 = vsub.s32 0, %v93
  %v95 = vsel %vm89, %v94, %v93
  %vm96 = vcmp.lt.s32.totalorder %v74, 0
  %v97 = vsub.s32 0, %v74
  %v98 = vsel %vm96, %v97, %v74
  %v99 = vshrl.u32 %v98, 4
  %v100 = vand.u32 %v98, 15
  %v101 = vsub.s32 0, %v100
  %v102 = vsel %vm96, %v101, %v100
  %vm103 = vcmp.ne.s32.totalorder %v81, 0
  %vm104 = vcmp.ne.s32.totalorder %v88, 0
  %vm105 = vcmp.ne.s32.totalorder %v95, 0
  %vm106 = vcmp.ne.s32.totalorder %v102, 0
  %vm107 = vcmp.lt.s32.totalorder %v81, 0
  %vm108 = vcmp.lt.s32.totalorder %v88, 0
  %vm109 = vcmp.lt.s32.totalorder %v95, 0
  %vm110 = vcmp.lt.s32.totalorder %v102, 0
  %vm111 = vmand %vm107, %vm103
  %vm112 = vmand %vm108, %vm104
  %vm113 = vmand %vm109, %vm105
  %vm114 = vmand %vm110, %vm106
  %v115 = vadd.s32 %v81, 16
  %v116 = vadd.s32 %v88, 16
  %v117 = vadd.s32 %v95, 16
  %v118 = vadd.s32 %v102, 16
  %v119 = vsel %vm111, %v115, %v81
  %v120 = vsel %vm112, %v116, %v88
  %v121 = vsel %vm113, %v117, %v95
  %v122 = vsel %vm114, %v118, %v102
  %vm123 = vcmp.ne.s32.totalorder %v119, 0
  %vm124 = vcmp.ne.s32.totalorder %v120, 0
  %vm125 = vcmp.ne.s32.totalorder %v121, 0
  %vm126 = vcmp.ne.s32.totalorder %v122, 0
  %vm127 = vcmp.ne.s32.totalorder %v119, 15
  %vm128 = vcmp.ne.s32.totalorder %v120, 15
  %vm129 = vcmp.ne.s32.totalorder %v121, 15
  %vm130 = vcmp.ne.s32.totalorder %v122, 15
  %v131 = vld [vmem:[#allocation2 + $0x7] sm:$0xff]
  %v132 = vld [vmem:[#allocation2 + $0xf] sm:$0xff]
  %v133 = vld [vmem:[#allocation2 + $0x17] sm:$0xff]
  %v134 = vld [vmem:[#allocation2 + $0x1f] sm:$0xff]
  %v135 = vsel %vm123, 1, 0
  %v136 = vsel %vm124, 1, 0
  %v137 = vsel %vm125, 1, 0
  %v138 = vsel %vm126, 1, 0
  %vm139 = vcmp.eq.s32.totalorder %v135, 1
  %vm140 = vcmp.eq.s32.totalorder %v136, 1
  %vm141 = vcmp.eq.s32.totalorder %v137, 1
  %vm142 = vcmp.eq.s32.totalorder %v138, 1
  %v143 = vsel %vm139, %v131, 0.0
  %v144 = vsel %vm140, %v132, 0.0
  %v145 = vsel %vm141, %v133, 0.0
  %v146 = vsel %vm142, %v134, 0.0
  %v147 = vld [vmem:[#allocation2 + $0x9] sm:$0xff]
  %v148 = vld [vmem:[#allocation2 + $0x11] sm:$0xff]
  %v149 = vld [vmem:[#allocation2 + $0x19] sm:$0xff]
  %v150 = vld [vmem:[#allocation2 + $0x21] sm:$0xff]
  %v151 = vsel %vm127, 1, 0
  %v152 = vsel %vm128, 1, 0
  %v153 = vsel %vm129, 1, 0
  %v154 = vsel %vm130, 1, 0
  %vm155 = vcmp.eq.s32.totalorder %v151, 1
  %vm156 = vcmp.eq.s32.totalorder %v152, 1
  %vm157 = vcmp.eq.s32.totalorder %v153, 1
  %vm158 = vcmp.eq.s32.totalorder %v154, 1
  %v159 = vsel %vm155, %v147, 0.0
  %v160 = vsel %vm156, %v148, 0.0
  %v161 = vsel %vm157, %v149, 0.0
  %v162 = vsel %vm158, %v150, 0.0
  %v163 = vadd.f32 %v143, %v159
  %v164 = vadd.f32 %v144, %v160
  %v165 = vadd.f32 %v145, %v161
  %v166 = vadd.f32 %v146, %v162
  %v167 = vmul.f32 %v163, 0.5
  %v168 = vmul.f32 %v164, 0.5
  %v169 = vmul.f32 %v165, 0.5
  %v170 = vmul.f32 %v166, 0.5
  %v171 = vadd.f32 %v58, %v167
  %v172 = vadd.f32 %v59, %v168
  %v173 = vadd.f32 %v60, %v169
  %v174 = vadd.f32 %v61, %v170
  %v175 = vmul.f32 %v8, 4.0
  %v176 = vmul.f32 %v9, 4.0
  %v177 = vmul.f32 %v10, 4.0
  %v178 = vmul.f32 %v11, 4.0
  %v179 = vsub.f32 %v171, %v175
  %v180 = vsub.f32 %v172, %v176
  %v181 = vsub.f32 %v173, %v177
  %v182 = vsub.f32 %v174, %v178
  %183 = vst.msk [vmem:[%s1] sm:$0xff] %vm62, %v179
  %184 = vst.msk [vmem:[%s1 + $0x8] sm:$0xff] %vm62, %v180
  %185 = vst.msk [vmem:[%s1 + $0x10] sm:$0xff] %vm62, %v181
  %186 = vst.msk [vmem:[%s1 + $0x18] sm:$0xff] %vm62, %v182
  // Predicated region
  $region6: #{tpu_custom_call.1} parent=0 // pred_check
    _
  $region7: #{tpu_custom_call.1} parent=0 // pred_check_branch
    %188 = sbr.rel (0) target = $region9
  $region8: #{tpu_custom_call.1} parent=0 // pred_region
    _
  $region9: #{tpu_custom_call.1} parent=0 // pred_fallthru
    _
  // Predicated region
  $region10: #{tpu_custom_call.1} parent=0 // pred_check
    _
  $region11: #{tpu_custom_call.1} parent=0 // pred_check_branch
    %190 = sbr.rel (0) target = $region13
  $region12: #{tpu_custom_call.1} parent=0 // pred_region
    _
  $region13: #{tpu_custom_call.1} parent=0 // pred_fallthru
    _

</llo_original>
